<compile_context>
chip_gen: v7x
topology: tpu7x:2x2x1
jax: 0.10.0
libtpu: 0.0.40
codegen_flags: <defaults>
</compile_context>

<pallas_src>
import functools
import math

import jax
import jax.numpy as jnp
from jax.experimental import pallas as pl
from jax.experimental.pallas import tpu as pltpu

EPS = 1e-6          # LayerNorm eps from the PyTorch module
MISH_CLAMP = 20.0   # exp() input clamp; tanh(softplus(x)) == 1.0 in f32 beyond this


def _round_up(n, m):
    return ((n + m - 1) // m) * m


def _tensorcores_per_chip():
    """2 on v7x (megacore split pays off), 1 on v5e/v6e."""
    try:
        kind = jax.devices()[0].device_kind.lower()
    except Exception:
        return 1
    return 2 if ("v7" in kind or "tpu7" in kind) else 1


def generator_kernel(x_ref, vecs_ref, w1_ref, w2_ref, c2_ref, o_ref):
    """One row-tile: LN -> (Dropout) -> Linear -> Mish -> LN -> (Dropout) -> Linear."""
    H = x_ref.shape[-1]
    O = o_ref.shape[-1]
    x = x_ref[...].astype(jnp.float32)

    # Packed (5, H) parameter block: [g1, b1, c1, g2, b2]
    g1 = vecs_ref[0:1, :]
    b1 = vecs_ref[1:2, :]
    c1 = vecs_ref[2:3, :]
    g2 = vecs_ref[3:4, :]
    b2 = vecs_ref[4:5, :]

    # ---- LayerNorm 1 (torch.std is unbiased: divide by H-1; eps added to std) ----
    mean1 = jnp.mean(x, axis=-1, keepdims=True)
    d1 = x - mean1
    std1 = jnp.sqrt(jnp.sum(d1 * d1, axis=-1, keepdims=True) * (1.0 / (H - 1)))
    inv1 = pl.reciprocal(std1 + EPS, approx=True)          # EUP, per-row column only
    xn = (d1 * inv1) * g1 + b1

    # ---- Dropout: identity in inference mode ----
    # TODO(synk): training-mode dropout (stochastic mask) not implemented; eval semantics used.

    # ---- Linear (H -> H) on the MXU, bf16 operands, f32 accumulation ----
    h = jnp.dot(xn.astype(jnp.bfloat16), w1_ref[...],
                preferred_element_type=jnp.float32) + c1

    # ---- Mish: x * tanh(softplus(x)) via single-exp algebraic identity ----
    # tanh(log(1+e)) = 1 - 2/((1+e)^2 + 1), with e = exp(h) (clamped).
    # The divide is expressed as an EUP reciprocal (free-ish slot next to exp).
    e = jnp.exp(jnp.minimum(h, MISH_CLAMP))
    n = (1.0 + e) * (1.0 + e)
    h = h * (1.0 - 2.0 * pl.reciprocal(n + 1.0, approx=True))

    # ---- LayerNorm 2 ----
    mean2 = jnp.mean(h, axis=-1, keepdims=True)
    d2 = h - mean2
    std2 = jnp.sqrt(jnp.sum(d2 * d2, axis=-1, keepdims=True) * (1.0 / (H - 1)))
    inv2 = pl.reciprocal(std2 + EPS, approx=True)
    hn = (d2 * inv2) * g2 + b2

    # ---- Final Linear (H -> O_pad) on the MXU; store only the true O columns ----
    out = jnp.dot(hn.astype(jnp.bfloat16), w2_ref[...],
                  preferred_element_type=jnp.float32) + c2_ref[...]
    o_ref[...] = out[:, :O].astype(o_ref.dtype)


def generator_proj(x_bf16, params, out_features, *, tile_rows=1024):
    """Run the projection stack on a (N, H) bf16 input. Returns (N, out_features) f32."""
    N, H = x_bf16.shape
    O_pad = params["w2p"].shape[1]

    # Row tile: large, multiple of 8.  Only force >=2 grid steps when the chip
    # actually has 2 TensorCores to feed (v7x megacore); on v5e/v6e a single
    # grid step avoids pure per-step pipeline overhead.
    ncores = _tensorcores_per_chip()
    if ncores > 1:
        tr = min(tile_rows, max(8, _round_up(pl.cdiv(N, ncores), 8)))
    else:
        tr = min(tile_rows, _round_up(N, 8))
    grid = (pl.cdiv(N, tr),)   # boundary block handled by Pallas (row-wise ops only)

    def bcast(shape):  # whole-parameter block, identical at every grid point
        return pl.BlockSpec(shape, lambda i: tuple(0 for _ in shape))

    out = pl.pallas_call(
        generator_kernel,
        out_shape=jax.ShapeDtypeStruct((N, out_features), jnp.float32),
        grid_spec=pltpu.PrefetchScalarGridSpec(
            num_scalar_prefetch=0,
            grid=grid,
            in_specs=[
                pl.BlockSpec((tr, H), lambda i: (i, 0)),   # x tile (bf16)
                bcast((5, H)),                             # packed [g1,b1,c1,g2,b2]
                bcast((H, H)),                             # Linear1 weight (in, out), bf16
                bcast((H, O_pad)),                         # Linear2 weight padded, bf16
                bcast((1, O_pad)),                         # Linear2 bias padded
            ],
            out_specs=pl.BlockSpec((tr, out_features), lambda i: (i, 0)),
        ),
        compiler_params=pltpu.CompilerParams(
            dimension_semantics=("parallel",),
            vmem_limit_bytes=32 * 1024 * 1024,
        ),
    )(x_bf16, params["vecs"], params["w1"], params["w2p"], params["c2p"])
    return out


@functools.partial(jax.jit, static_argnums=(3,))
def _gather_and_proj(x_flat, masks_flat, params, out_features):
    """Masked row gather (fixed upper bound) BEFORE the projection, all on device."""
    N = x_flat.shape[0]
    idx = jnp.nonzero(masks_flat, size=N, fill_value=0)[0]       # true indices first
    x_sel = jnp.take(x_flat, idx, axis=0).astype(jnp.bfloat16)   # (N, H) bf16, selected order
    proj = generator_proj(x_sel, params, out_features)           # (N, O) f32, tail = filler
    return proj, jnp.sum(masks_flat.astype(jnp.int32))


def generator_forward(x, masks, params, out_features):
    """Full Generator.forward: masked row selection + proj stack (Pallas).

    The gather and projection run on device under jit; only the scalar mask
    count is brought to host to realize the dynamically-shaped output that the
    PyTorch module returns (torch.index_select on masks == True).
    """
    B, M, H = x.shape
    x_flat = x.reshape(B * M, H)              # rearrange 'b m h -> (b m) h'
    masks_flat = masks.reshape(-1)            # rearrange 'b m -> (b m)'
    gathered, count = _gather_and_proj(x_flat, masks_flat, params, out_features)
    return gathered[: int(count)]


def init_params(key, hidden, output):
    """Parameter init matching the module's shapes (LayerNorm + Linear), packed for the kernel."""
    ks = jax.random.split(key, 4)
    bound = 1.0 / math.sqrt(hidden)
    o_pad = _round_up(output, 128)

    g1 = jnp.ones((hidden,), jnp.float32)                                    # LN1 a_2
    b1 = jnp.zeros((hidden,), jnp.float32)                                   # LN1 b_2
    c1 = jax.random.uniform(ks[1], (hidden,), jnp.float32, -bound, bound)    # Linear1 bias
    g2 = jnp.ones((hidden,), jnp.float32)                                    # LN2 a_2
    b2 = jnp.zeros((hidden,), jnp.float32)                                   # LN2 b_2
    vecs = jnp.stack([g1, b1, c1, g2, b2], axis=0)                           # (5, H)

    w1 = jax.random.uniform(ks[0], (hidden, hidden), jnp.float32, -bound, bound)  # (in, out) = W.T
    w2 = jax.random.uniform(ks[2], (hidden, output), jnp.float32, -bound, bound)
    c2 = jax.random.uniform(ks[3], (output,), jnp.float32, -bound, bound)

    w2p = jnp.zeros((hidden, o_pad), jnp.float32).at[:, :output].set(w2)
    c2p = jnp.zeros((1, o_pad), jnp.float32).at[:, :output].set(c2)

    return {
        "vecs": vecs,
        "w1": w1.astype(jnp.bfloat16),
        "w2p": w2p.astype(jnp.bfloat16),
        "c2p": c2p,
    }


if __name__ == "__main__":
    B, M, H, O = 2, 16, 32, 8   # batch, nodes-per-graph, hidden_features, output_features

    key = jax.random.PRNGKey(0)
    kx, km, kp = jax.random.split(key, 3)

    x = jax.random.normal(kx, (B, M, H), jnp.float32)
    masks = jax.random.bernoulli(km, 0.5, (B, M))
    params = init_params(kp, H, O)

    out = generator_forward(x, masks, params, O)
    jax.block_until_ready(out)

    n_sel = int(jax.device_get(jnp.sum(masks.astype(jnp.int32))))
    assert out.shape == (n_sel, O), out.shape
    assert bool(jnp.all(jnp.isfinite(out)))
    print("KERNEL_OK")
</pallas_src>

<mosaic_0001>
module attributes {stable_mosaic.version = 11 : i64} {
  func.func private @main(%arg0: i32) attributes {dimension_semantics = [#tpu.dimension_semantics<core_parallel>], iteration_bounds = array<i64: 2>, tpu.core_type = #tpu.core_type<sc_scalar_subcore>, window_params = []} {
    return
  }
}

module attributes {stable_mosaic.version = 11 : i64} {
  func.func private @main(%arg0: i32) attributes {dimension_semantics = [#tpu.dimension_semantics<core_parallel>], iteration_bounds = array<i64: 2>, tpu.core_type = #tpu.core_type<sc_scalar_subcore>, window_params = []} {
    return
  }
}

module attributes {stable_mosaic.version = 11 : i64} {
  func.func @generator_kernel(%arg0: i32, %arg1: memref<32x32xbf16, #tpu.memory_space<vmem>>, %arg2: memref<5x32xf32, #tpu.memory_space<vmem>>, %arg3: memref<32x32xbf16, #tpu.memory_space<vmem>>, %arg4: memref<32x128xbf16, #tpu.memory_space<vmem>>, %arg5: memref<1x128xf32, #tpu.memory_space<vmem>>, %arg6: memref<32x8xf32, #tpu.memory_space<vmem>>) attributes {dimension_semantics = [#tpu.dimension_semantics<parallel>], iteration_bounds = array<i64: 1>, scalar_prefetch = 0 : i64, scratch_operands = 0 : i64, tpu.core_type = #tpu.core_type<tc>, window_params = [{transform_indices = @transform_0, window_bounds = array<i64: 32, 32>}, {pipeline_mode = #tpu.pipeline_mode<synchronous>, transform_indices = @transform_1, window_bounds = array<i64: 5, 32>}, {pipeline_mode = #tpu.pipeline_mode<synchronous>, transform_indices = @transform_2, window_bounds = array<i64: 32, 32>}, {pipeline_mode = #tpu.pipeline_mode<synchronous>, transform_indices = @transform_3, window_bounds = array<i64: 32, 128>}, {pipeline_mode = #tpu.pipeline_mode<synchronous>, transform_indices = @transform_4, window_bounds = array<i64: 1, 128>}, {transform_indices = @transform_5, window_bounds = array<i64: 32, 8>}]} {
    %c0 = arith.constant 0 : index
    %c0_0 = arith.constant 0 : index
    %0 = vector.load %arg1[%c0, %c0_0] : memref<32x32xbf16, #tpu.memory_space<vmem>>, vector<32x32xbf16>
    %1 = arith.extf %0 : vector<32x32xbf16> to vector<32x32xf32>
    %c0_1 = arith.constant 0 : index
    %c0_2 = arith.constant 0 : index
    %2 = vector.load %arg2[%c0_1, %c0_2] : memref<5x32xf32, #tpu.memory_space<vmem>>, vector<1x32xf32>
    %c1 = arith.constant 1 : index
    %c0_3 = arith.constant 0 : index
    %3 = vector.load %arg2[%c1, %c0_3] : memref<5x32xf32, #tpu.memory_space<vmem>>, vector<1x32xf32>
    %c2 = arith.constant 2 : index
    %c0_4 = arith.constant 0 : index
    %4 = vector.load %arg2[%c2, %c0_4] : memref<5x32xf32, #tpu.memory_space<vmem>>, vector<1x32xf32>
    %c3 = arith.constant 3 : index
    %c0_5 = arith.constant 0 : index
    %5 = vector.load %arg2[%c3, %c0_5] : memref<5x32xf32, #tpu.memory_space<vmem>>, vector<1x32xf32>
    %c4 = arith.constant 4 : index
    %c0_6 = arith.constant 0 : index
    %6 = vector.load %arg2[%c4, %c0_6] : memref<5x32xf32, #tpu.memory_space<vmem>>, vector<1x32xf32>
    %cst = arith.constant dense<0.000000e+00> : vector<32xf32>
    %7 = vector.multi_reduction <add>, %1, %cst [1] : vector<32x32xf32> to vector<32xf32>
    %8 = vector.shape_cast %7 : vector<32xf32> to vector<32x1xf32>
    %cst_7 = arith.constant 3.200000e+01 : f32
    %9 = vector.broadcast %cst_7 : f32 to vector<32x1xf32>
    %10 = arith.divf %8, %9 : vector<32x1xf32>
    %11 = vector.broadcast %10 : vector<32x1xf32> to vector<32x32xf32>
    %12 = arith.subf %1, %11 : vector<32x32xf32>
    %13 = arith.mulf %12, %12 : vector<32x32xf32>
    %cst_8 = arith.constant dense<0.000000e+00> : vector<32xf32>
    %14 = vector.multi_reduction <add>, %13, %cst_8 [1] : vector<32x32xf32> to vector<32xf32>
    %15 = vector.shape_cast %14 : vector<32xf32> to vector<32x1xf32>
    %cst_9 = arith.constant 0.0322580636 : f32
    %16 = vector.broadcast %cst_9 : f32 to vector<32x1xf32>
    %17 = arith.mulf %15, %16 : vector<32x1xf32>
    %18 = math.sqrt %17 : vector<32x1xf32>
    %cst_10 = arith.constant 9.99999997E-7 : f32
    %19 = vector.broadcast %cst_10 : f32 to vector<32x1xf32>
    %20 = arith.addf %18, %19 : vector<32x1xf32>
    %21 = tpu.reciprocal %20 {approx = true} : vector<32x1xf32> -> vector<32x1xf32>
    %22 = vector.broadcast %21 : vector<32x1xf32> to vector<32x32xf32>
    %23 = arith.mulf %12, %22 : vector<32x32xf32>
    %24 = vector.broadcast %2 : vector<1x32xf32> to vector<32x32xf32>
    %25 = arith.mulf %23, %24 : vector<32x32xf32>
    %26 = vector.broadcast %3 : vector<1x32xf32> to vector<32x32xf32>
    %27 = arith.addf %25, %26 : vector<32x32xf32>
    %28 = arith.truncf %27 : vector<32x32xf32> to vector<32x32xbf16>
    %c0_11 = arith.constant 0 : index
    %c0_12 = arith.constant 0 : index
    %29 = vector.load %arg3[%c0_11, %c0_12] : memref<32x32xbf16, #tpu.memory_space<vmem>>, vector<32x32xbf16>
    %cst_13 = arith.constant dense<0.000000e+00> : vector<32x32xf32>
    %30 = tpu.matmul %28, %29, %cst_13 {dimension_numbers = #tpu.dot_dimension_numbers<[1], [0], [0], [1], [0, 0, 1, 1], [], []>} : vector<32x32xbf16>, vector<32x32xbf16>, vector<32x32xf32> -> vector<32x32xf32>
    %31 = vector.broadcast %4 : vector<1x32xf32> to vector<32x32xf32>
    %32 = arith.addf %30, %31 : vector<32x32xf32>
    %cst_14 = arith.constant 2.000000e+01 : f32
    %33 = vector.broadcast %cst_14 : f32 to vector<32x32xf32>
    %34 = arith.minimumf %32, %33 : vector<32x32xf32>
    %35 = math.exp %34 : vector<32x32xf32>
    %cst_15 = arith.constant 1.000000e+00 : f32
    %36 = vector.broadcast %cst_15 : f32 to vector<32x32xf32>
    %37 = arith.addf %36, %35 : vector<32x32xf32>
    %cst_16 = arith.constant 1.000000e+00 : f32
    %38 = vector.broadcast %cst_16 : f32 to vector<32x32xf32>
    %39 = arith.addf %38, %35 : vector<32x32xf32>
    %40 = arith.mulf %37, %39 : vector<32x32xf32>
    %cst_17 = arith.constant 1.000000e+00 : f32
    %41 = vector.broadcast %cst_17 : f32 to vector<32x32xf32>
    %42 = arith.addf %40, %41 : vector<32x32xf32>
    %43 = tpu.reciprocal %42 {approx = true} : vector<32x32xf32> -> vector<32x32xf32>
    %cst_18 = arith.constant 2.000000e+00 : f32
    %44 = vector.broadcast %cst_18 : f32 to vector<32x32xf32>
    %45 = arith.mulf %44, %43 : vector<32x32xf32>
    %cst_19 = arith.constant 1.000000e+00 : f32
    %46 = vector.broadcast %cst_19 : f32 to vector<32x32xf32>
    %47 = arith.subf %46, %45 : vector<32x32xf32>
    %48 = arith.mulf %32, %47 : vector<32x32xf32>
    %cst_20 = arith.constant dense<0.000000e+00> : vector<32xf32>
    %49 = vector.multi_reduction <add>, %48, %cst_20 [1] : vector<32x32xf32> to vector<32xf32>
    %50 = vector.shape_cast %49 : vector<32xf32> to vector<32x1xf32>
    %cst_21 = arith.constant 3.200000e+01 : f32
    %51 = vector.broadcast %cst_21 : f32 to vector<32x1xf32>
    %52 = arith.divf %50, %51 : vector<32x1xf32>
    %53 = vector.broadcast %52 : vector<32x1xf32> to vector<32x32xf32>
    %54 = arith.subf %48, %53 : vector<32x32xf32>
    %55 = arith.mulf %54, %54 : vector<32x32xf32>
    %cst_22 = arith.constant dense<0.000000e+00> : vector<32xf32>
    %56 = vector.multi_reduction <add>, %55, %cst_22 [1] : vector<32x32xf32> to vector<32xf32>
    %57 = vector.shape_cast %56 : vector<32xf32> to vector<32x1xf32>
    %cst_23 = arith.constant 0.0322580636 : f32
    %58 = vector.broadcast %cst_23 : f32 to vector<32x1xf32>
    %59 = arith.mulf %57, %58 : vector<32x1xf32>
    %60 = math.sqrt %59 : vector<32x1xf32>
    %cst_24 = arith.constant 9.99999997E-7 : f32
    %61 = vector.broadcast %cst_24 : f32 to vector<32x1xf32>
    %62 = arith.addf %60, %61 : vector<32x1xf32>
    %63 = tpu.reciprocal %62 {approx = true} : vector<32x1xf32> -> vector<32x1xf32>
    %64 = vector.broadcast %63 : vector<32x1xf32> to vector<32x32xf32>
    %65 = arith.mulf %54, %64 : vector<32x32xf32>
    %66 = vector.broadcast %5 : vector<1x32xf32> to vector<32x32xf32>
    %67 = arith.mulf %65, %66 : vector<32x32xf32>
    %68 = vector.broadcast %6 : vector<1x32xf32> to vector<32x32xf32>
    %69 = arith.addf %67, %68 : vector<32x32xf32>
    %70 = arith.truncf %69 : vector<32x32xf32> to vector<32x32xbf16>
    %c0_25 = arith.constant 0 : index
    %c0_26 = arith.constant 0 : index
    %71 = vector.load %arg4[%c0_25, %c0_26] : memref<32x128xbf16, #tpu.memory_space<vmem>>, vector<32x128xbf16>
    %cst_27 = arith.constant dense<0.000000e+00> : vector<32x128xf32>
    %72 = tpu.matmul %70, %71, %cst_27 {dimension_numbers = #tpu.dot_dimension_numbers<[1], [0], [0], [1], [0, 0, 1, 1], [], []>} : vector<32x32xbf16>, vector<32x128xbf16>, vector<32x128xf32> -> vector<32x128xf32>
    %c0_28 = arith.constant 0 : index
    %c0_29 = arith.constant 0 : index
    %73 = vector.load %arg5[%c0_28, %c0_29] : memref<1x128xf32, #tpu.memory_space<vmem>>, vector<1x128xf32>
    %74 = vector.broadcast %73 : vector<1x128xf32> to vector<32x128xf32>
    %75 = arith.addf %72, %74 : vector<32x128xf32>
    %76 = vector.extract_strided_slice %75 {offsets = [0, 0], sizes = [32, 8], strides = [1, 1]} : vector<32x128xf32> to vector<32x8xf32>
    %c0_30 = arith.constant 0 : index
    %c0_31 = arith.constant 0 : index
    %77 = vector.load %arg6[%c0_30, %c0_31] : memref<32x8xf32, #tpu.memory_space<vmem>>, vector<32x8xf32>
    tpu.vector_store %arg6[%c0_30, %c0_31], %76 {strides = array<i32>} : memref<32x8xf32, #tpu.memory_space<vmem>>, vector<32x8xf32>,
    return
  }
  func.func @transform_0(%arg0: i32) -> (i32, i32) {
    %c0_i32 = arith.constant 0 : i32
    %c0_i32_0 = arith.constant 0 : i32
    return %arg0, %c0_i32 : i32, i32
  }
  func.func @transform_1(%arg0: i32) -> (i32, i32) {
    %c0_i32 = arith.constant 0 : i32
    %c0_i32_0 = arith.constant 0 : i32
    %c0_i32_1 = arith.constant 0 : i32
    return %c0_i32, %c0_i32_0 : i32, i32
  }
  func.func @transform_2(%arg0: i32) -> (i32, i32) {
    %c0_i32 = arith.constant 0 : i32
    %c0_i32_0 = arith.constant 0 : i32
    %c0_i32_1 = arith.constant 0 : i32
    return %c0_i32, %c0_i32_0 : i32, i32
  }
  func.func @transform_3(%arg0: i32) -> (i32, i32) {
    %c0_i32 = arith.constant 0 : i32
    %c0_i32_0 = arith.constant 0 : i32
    %c0_i32_1 = arith.constant 0 : i32
    return %c0_i32, %c0_i32_0 : i32, i32
  }
  func.func @transform_4(%arg0: i32) -> (i32, i32) {
    %c0_i32 = arith.constant 0 : i32
    %c0_i32_0 = arith.constant 0 : i32
    %c0_i32_1 = arith.constant 0 : i32
    return %c0_i32, %c0_i32_0 : i32, i32
  }
  func.func @transform_5(%arg0: i32) -> (i32, i32) {
    %c0_i32 = arith.constant 0 : i32
    %c0_i32_0 = arith.constant 0 : i32
    return %arg0, %c0_i32 : i32, i32
  }
}

</mosaic_0001>

<llo_original>
// kernel: _gather_and_proj.1
$region0: #{_gather_and_proj.1}
  #allocation0 [shape = 'u32[]', space=smem, size = 0x4, offset = 0x4, fixed_abs, tag = 'smem constant byte address 0x4 - core index']
  #allocation1 [shape = 'u32[144,128]{1,0:T(1,128)}', space=vmem, size = 0x12000, scoped, tag = 'internal scratch']
  %s0 = inlined_call_operand.vmem [shape: bf16[32,32], index: 0, kind: input, shape index: {}]
  %s1 = inlined_call_operand.vmem [shape: f32[5,32], index: 1, kind: input, shape index: {}]
  %s2 = inlined_call_operand.vmem [shape: bf16[32,32], index: 2, kind: input, shape index: {}]
  %s3 = inlined_call_operand.vmem [shape: bf16[32,128], index: 3, kind: input, shape index: {}]
  %s4 = inlined_call_operand.vmem [shape: f32[1,128], index: 4, kind: input, shape index: {}]
  %s5 = inlined_call_operand.vmem [shape: f32[32,8], index: 5, kind: output, shape index: {}]
  %s6 = sld [smem:[#allocation0]]
  $region30: #{_gather_and_proj.1} parent=0
    _
  %s8 = ssub.s32 1, %s6
  %s9 = scalar_select 0, %s8, %s6
  // Predicated region
  $region2: #{_gather_and_proj.1} parent=0 // pred_check
    _
  $region3: #{_gather_and_proj.1} parent=0 // pred_check_branch
    %11 = sbr.rel (0) target = $region5
  $region4: #{_gather_and_proj.1} parent=0 // pred_region
    _
  $region5: #{_gather_and_proj.1} parent=0 // pred_fallthru
    _
  // Predicated region
  $region6: #{_gather_and_proj.1} parent=0 // pred_check
    _
  $region7: #{_gather_and_proj.1} parent=0 // pred_check_branch
    %13 = sbr.rel (0) target = $region9
  $region8: #{_gather_and_proj.1} parent=0 // pred_region
    _
  $region9: #{_gather_and_proj.1} parent=0 // pred_fallthru
    _
  // Predicated region
  $region10: #{_gather_and_proj.1} parent=0 // pred_check
    _
  $region11: #{_gather_and_proj.1} parent=0 // pred_check_branch
    %15 = sbr.rel (0) target = $region13
  $region12: #{_gather_and_proj.1} parent=0 // pred_region
    _
  $region13: #{_gather_and_proj.1} parent=0 // pred_fallthru
    _
  // Predicated region
  $region14: #{_gather_and_proj.1} parent=0 // pred_check
    _
  $region15: #{_gather_and_proj.1} parent=0 // pred_check_branch
    %17 = sbr.rel (0) target = $region17
  $region16: #{_gather_and_proj.1} parent=0 // pred_region
    _
  $region17: #{_gather_and_proj.1} parent=0 // pred_fallthru
    _
  // Predicated region
  $region18: #{_gather_and_proj.1} parent=0 // pred_check
    _
  $region19: #{_gather_and_proj.1} parent=0 // pred_check_branch
    %19 = sbr.rel (0) target = $region21
  $region20: #{_gather_and_proj.1} parent=0 // pred_region
    _
  $region21: #{_gather_and_proj.1} parent=0 // pred_fallthru
    _
  %v21 = vld [vmem:[%s0] sm:$0xf]
  %v22 = vld [vmem:[%s0 + $0x4] sm:$0xf]
  %v23 = vld [vmem:[%s0 + $0x8] sm:$0xf]
  %v24 = vld [vmem:[%s0 + $0xc] sm:$0xf]
  %v25 = vunpack.c.l.bf16 %v21
  %v26 = vunpack.c.l.bf16 %v22
  %v27 = vunpack.c.l.bf16 %v23
  %v28 = vunpack.c.l.bf16 %v24
  %v29 = vld [vmem:[%s1] sm:$0x1]
  %v30 = vld [vmem:[%s1 + $0x1] sm:$0x1]
  %v31 = vld [vmem:[%s1 + $0x2] sm:$0x1]
  %v32 = vld [vmem:[%s1 + $0x3] sm:$0x1]
  %v33 = vld [vmem:[%s1 + $0x4] sm:$0x1]
  %vm34 = vcmask 261120
  %v35 = vsel %vm34, %v25, 0.0
  %36 = vadd.xlane.f32.xlu0 %v35
  %v37 = vpop.xlane.xlu0 %36
  %v38 = vsel %vm34, %v26, 0.0
  %39 = vadd.xlane.f32.xlu0 %v38
  %v40 = vpop.xlane.xlu0 %39
  %v41 = vsel %vm34, %v27, 0.0
  %42 = vadd.xlane.f32.xlu0 %v41
  %v43 = vpop.xlane.xlu0 %42
  %v44 = vsel %vm34, %v28, 0.0
  %45 = vadd.xlane.f32.xlu0 %v44
  %v46 = vpop.xlane.xlu0 %45
  %v47 = vrcp.pop 32.0
  %v48 = vmul.f32 %v37, %v47
  %v49 = vmul.f32 %v40, %v47
  %v50 = vmul.f32 %v43, %v47
  %v51 = vmul.f32 %v46, %v47
  %v52 = vsub.f32 %v25, %v48
  %v53 = vsub.f32 %v26, %v49
  %v54 = vsub.f32 %v27, %v50
  %v55 = vsub.f32 %v28, %v51
  %v56 = vmul.f32 %v52, %v52
  %v57 = vmul.f32 %v53, %v53
  %v58 = vmul.f32 %v54, %v54
  %v59 = vmul.f32 %v55, %v55
  %v60 = vsel %vm34, %v56, 0.0
  %61 = vadd.xlane.f32.xlu0 %v60
  %v62 = vpop.xlane.xlu0 %61
  %v63 = vsel %vm34, %v57, 0.0
  %64 = vadd.xlane.f32.xlu0 %v63
  %v65 = vpop.xlane.xlu0 %64
  %v66 = vsel %vm34, %v58, 0.0
  %67 = vadd.xlane.f32.xlu0 %v66
  %v68 = vpop.xlane.xlu0 %67
  %v69 = vsel %vm34, %v59, 0.0
  %70 = vadd.xlane.f32.xlu0 %v69
  %v71 = vpop.xlane.xlu0 %70
  %v72 = vmul.f32 %v62, 0.032258064
  %v73 = vmul.f32 %v65, 0.032258064
  %v74 = vmul.f32 %v68, 0.032258064
  %v75 = vmul.f32 %v71, 0.032258064
  %v76 = vrsqrt.pop %v72
  %v77 = vmul.f32 %v72, %v76
  %vm78 = vcmp.eq.f32.partialorder %v72, inf
  %v79 = vsel %vm78, %v72, %v77
  %vm80 = vcmp.eq.f32.partialorder %v72, 0.0
  %v81 = vand.u32 %v72, 2147483648
  %v82 = vsel %vm80, %v81, %v79
  %v83 = vrsqrt.pop %v73
  %v84 = vmul.f32 %v73, %v83
  %vm85 = vcmp.eq.f32.partialorder %v73, inf
  %v86 = vsel %vm85, %v73, %v84
  %vm87 = vcmp.eq.f32.partialorder %v73, 0.0
  %v88 = vand.u32 %v73, 2147483648
  %v89 = vsel %vm87, %v88, %v86
  %v90 = vrsqrt.pop %v74
  %v91 = vmul.f32 %v74, %v90
  %vm92 = vcmp.eq.f32.partialorder %v74, inf
  %v93 = vsel %vm92, %v74, %v91
  %vm94 = vcmp.eq.f32.partialorder %v74, 0.0
  %v95 = vand.u32 %v74, 2147483648
  %v96 = vsel %vm94, %v95, %v93
  %v97 = vrsqrt.pop %v75
  %v98 = vmul.f32 %v75, %v97
  %vm99 = vcmp.eq.f32.partialorder %v75, inf
  %v100 = vsel %vm99, %v75, %v98
  %vm101 = vcmp.eq.f32.partialorder %v75, 0.0
  %v102 = vand.u32 %v75, 2147483648
  %v103 = vsel %vm101, %v102, %v100
  %v104 = vadd.f32 %v82, 1e-06
  %v105 = vadd.f32 %v89, 1e-06
  %v106 = vadd.f32 %v96, 1e-06
  %v107 = vadd.f32 %v103, 1e-06
  %v108 = vrcp.pop %v104
  %v109 = vrcp.pop %v105
  %v110 = vrcp.pop %v106
  %v111 = vrcp.pop %v107
  %v112 = vmul.f32 %v52, %v108
  %v113 = vmul.f32 %v53, %v109
  %v114 = vmul.f32 %v54, %v110
  %v115 = vmul.f32 %v55, %v111
  %v116 = vlaneseq
  %v117 = vshrl.u32 %v116, 7
  %v118 = vsub.s32 0, %v117
  %v119 = vrot.slane %v29, %v118
  %v120 = vmul.f32 %v112, %v119
  %v121 = vmul.f32 %v113, %v119
  %v122 = vmul.f32 %v114, %v119
  %v123 = vmul.f32 %v115, %v119
  %v124 = vlaneseq
  %v125 = vshrl.u32 %v124, 7
  %v126 = vsub.s32 0, %v125
  %v127 = vrot.slane %v30, %v126
  %v128 = vadd.f32 %v120, %v127
  %v129 = vadd.f32 %v121, %v127
  %v130 = vadd.f32 %v122, %v127
  %v131 = vadd.f32 %v123, %v127
  %v132 = vpack.c.bf16 %v129, %v128
  %v133 = vpack.c.bf16 %v131, %v130
  %v134 = vld [vmem:[%s2] sm:$0xf]
  %v135 = vld [vmem:[%s2 + $0x4] sm:$0xf]
  %v136 = vld [vmem:[%s2 + $0x8] sm:$0xf]
  %v137 = vld [vmem:[%s2 + $0xc] sm:$0xf]
  %v138 = vlaneseq
  %v139 = vshrl.u32 %v138, 7
  %v140 = vsub.s32 0, %v139
  %v141 = vrot.slane %v31, %v140
  %v146 = vunpack.c.l.b16 %v134
  %v147 = vunpack.c.l.b16 %v135
  %v148 = vunpack.c.l.b16 %v136
  %v149 = vunpack.c.l.b16 %v137
  %v150 = vpack.c.b16 %v147, %v146
  %v151 = vpack.c.b16 %v149, %v148
  %v155 = vsel %vm34, %v132, 0
  %v158 = vsel %vm34, %v133, 0
  %160 = vmatprep.subr.bf16.mxu0 0
  %161 = vmatpush1.bf16.msra.mxu0 %v150
  %162 = vmatprep.subr.bf16.mxu0 0
  %163 = vmatpush1.bf16.msra.mxu0 %v151
  %164 = vmatprep.subr.bf16.mxu0 0
  %165 = vmatpush1.bf16.msra.mxu0 0
  %166 = vmatprep.subr.bf16.mxu0 0
  %167 = vmatpush1.bf16.msra.mxu0 0
  %168 = vmatprep.subr.bf16.mxu0 0
  %169 = vmatpush1.bf16.msra.mxu0 0
  %170 = vmatprep.subr.bf16.mxu0 0
  %171 = vmatpush1.bf16.msra.mxu0 0
  %172 = vmatprep.subr.bf16.mxu0 0
  %173 = vmatpush1.bf16.msra.mxu0 0
  %174 = vmatprep.subr.bf16.mxu0 0
  %175 = vmatpush1.bf16.msra.mxu0 0
  %176 = vmatprep.subr.bf16.mxu0 0
  %177 = vmatpush1.bf16.msra.mxu0 0
  %178 = vmatprep.subr.bf16.mxu0 0
  %179 = vmatpush1.bf16.msra.mxu0 0
  %180 = vmatprep.subr.bf16.mxu0 0
  %181 = vmatpush1.bf16.msra.mxu0 0
  %182 = vmatprep.subr.bf16.mxu0 0
  %183 = vmatpush1.bf16.msra.mxu0 0
  %184 = vmatprep.subr.bf16.mxu0 0
  %185 = vmatpush1.bf16.msra.mxu0 0
  %186 = vmatprep.subr.bf16.mxu0 0
  %187 = vmatpush1.bf16.msra.mxu0 0
  %188 = vmatprep.subr.bf16.mxu0 0
  %189 = vmatpush1.bf16.msra.mxu0 0
  %190 = vmatprep.subr.bf16.mxu0 0
  %191 = vmatpush1.bf16.msra.mxu0 0
  %192 = vmatprep.mubr.bf16.mxu0 0
  %193 = vmatmul.mubr.bf16.gmra.mrb[0].mxu0 %v155
  %v194 = vpop.f32.mrb[0].mxu0
  %v195 = vadd.f32 %v141, %v194
  %v196 = vpop.f32.mrb[0].mxu0
  %v197 = vpop.f32.mrb[0].mxu0
  %v198 = vadd.f32 %v141, %v197
  %v199 = vpop.f32.mrb[0].mxu0
  %200 = vmatprep.mubr.bf16.mxu0 0
  %201 = vmatmul.mubr.bf16.gmra.mrb[0].mxu0 %v158
  %v202 = vpop.f32.mrb[0].mxu0
  %v203 = vadd.f32 %v141, %v202
  %v204 = vpop.f32.mrb[0].mxu0
  %v205 = vpop.f32.mrb[0].mxu0
  %v206 = vadd.f32 %v141, %v205
  %v207 = vpop.f32.mrb[0].mxu0
  %208 = vdwg.mxu0
  %v209 = vmin.f32 %v195, 20.0
  %v210 = vmin.f32 %v198, 20.0
  %v211 = vmin.f32 %v203, 20.0
  %v212 = vmin.f32 %v206, 20.0
  %v213 = vmul.f32 %v209, 1.442695
  %v214 = vpow.pop %v213
  %v215 = vmul.f32 %v210, 1.442695
  %v216 = vpow.pop %v215
  %v217 = vmul.f32 %v211, 1.442695
  %v218 = vpow.pop %v217
  %v219 = vmul.f32 %v212, 1.442695
  %v220 = vpow.pop %v219
  %v221 = vadd.f32 %v214, 1.0
  %v222 = vadd.f32 %v216, 1.0
  %v223 = vadd.f32 %v218, 1.0
  %v224 = vadd.f32 %v220, 1.0
  %v225 = vmul.f32 %v221, %v221
  %v226 = vmul.f32 %v222, %v222
  %v227 = vmul.f32 %v223, %v223
  %v228 = vmul.f32 %v224, %v224
  %v229 = vadd.f32 %v225, 1.0
  %v230 = vadd.f32 %v226, 1.0
  %v231 = vadd.f32 %v227, 1.0
  %v232 = vadd.f32 %v228, 1.0
  %v233 = vrcp.pop %v229
  %v234 = vrcp.pop %v230
  %v235 = vrcp.pop %v231
  %v236 = vrcp.pop %v232
  %v237 = vmul.f32 %v233, 2.0
  %v238 = vmul.f32 %v234, 2.0
  %v239 = vmul.f32 %v235, 2.0
  %v240 = vmul.f32 %v236, 2.0
  %v241 = vsub.f32 1.0, %v237
  %v242 = vsub.f32 1.0, %v238
  %v243 = vsub.f32 1.0, %v239
  %v244 = vsub.f32 1.0, %v240
  %v245 = vmul.f32 %v195, %v241
  %v246 = vmul.f32 %v198, %v242
  %v247 = vmul.f32 %v203, %v243
  %v248 = vmul.f32 %v206, %v244
  %v249 = vsel %vm34, %v245, 0.0
  %250 = vadd.xlane.f32.xlu0 %v249
  %v251 = vpop.xlane.xlu0 %250
  %v252 = vsel %vm34, %v246, 0.0
  %253 = vadd.xlane.f32.xlu0 %v252
  %v254 = vpop.xlane.xlu0 %253
  %v255 = vsel %vm34, %v247, 0.0
  %256 = vadd.xlane.f32.xlu0 %v255
  %v257 = vpop.xlane.xlu0 %256
  %v258 = vsel %vm34, %v248, 0.0
  %259 = vadd.xlane.f32.xlu0 %v258
  %v260 = vpop.xlane.xlu0 %259
  %v261 = vmul.f32 %v251, %v47
  %v262 = vmul.f32 %v254, %v47
  %v263 = vmul.f32 %v257, %v47
  %v264 = vmul.f32 %v260, %v47
  %v265 = vsub.f32 %v245, %v261
  %v266 = vsub.f32 %v246, %v262
  %v267 = vsub.f32 %v247, %v263
  %v268 = vsub.f32 %v248, %v264
  %v269 = vmul.f32 %v265, %v265
  %v270 = vmul.f32 %v266, %v266
  %v271 = vmul.f32 %v267, %v267
  %v272 = vmul.f32 %v268, %v268
  %v273 = vsel %vm34, %v269, 0.0
  %274 = vadd.xlane.f32.xlu0 %v273
  %v275 = vpop.xlane.xlu0 %274
  %v276 = vsel %vm34, %v270, 0.0
  %277 = vadd.xlane.f32.xlu0 %v276
  %v278 = vpop.xlane.xlu0 %277
  %v279 = vsel %vm34, %v271, 0.0
  %280 = vadd.xlane.f32.xlu0 %v279
  %v281 = vpop.xlane.xlu0 %280
  %v282 = vsel %vm34, %v272, 0.0
  %283 = vadd.xlane.f32.xlu0 %v282
  %v284 = vpop.xlane.xlu0 %283
  %v285 = vmul.f32 %v275, 0.032258064
  %v286 = vmul.f32 %v278, 0.032258064
  %v287 = vmul.f32 %v281, 0.032258064
  %v288 = vmul.f32 %v284, 0.032258064
  %v289 = vrsqrt.pop %v285
  %v290 = vmul.f32 %v285, %v289
  %vm291 = vcmp.eq.f32.partialorder %v285, inf
  %v292 = vsel %vm291, %v285, %v290
  %vm293 = vcmp.eq.f32.partialorder %v285, 0.0
  %v294 = vand.u32 %v285, 2147483648
  %v295 = vsel %vm293, %v294, %v292
  %v296 = vrsqrt.pop %v286
  %v297 = vmul.f32 %v286, %v296
  %vm298 = vcmp.eq.f32.partialorder %v286, inf
  %v299 = vsel %vm298, %v286, %v297
  %vm300 = vcmp.eq.f32.partialorder %v286, 0.0
  %v301 = vand.u32 %v286, 2147483648
  %v302 = vsel %vm300, %v301, %v299
  %v303 = vrsqrt.pop %v287
  %v304 = vmul.f32 %v287, %v303
  %vm305 = vcmp.eq.f32.partialorder %v287, inf
  %v306 = vsel %vm305, %v287, %v304
  %vm307 = vcmp.eq.f32.partialorder %v287, 0.0
  %v308 = vand.u32 %v287, 2147483648
  %v309 = vsel %vm307, %v308, %v306
  %v310 = vrsqrt.pop %v288
  %v311 = vmul.f32 %v288, %v310
  %vm312 = vcmp.eq.f32.partialorder %v288, inf
  %v313 = vsel %vm312, %v288, %v311
  %vm314 = vcmp.eq.f32.partialorder %v288, 0.0
  %v315 = vand.u32 %v288, 2147483648
  %v316 = vsel %vm314, %v315, %v313
  %v317 = vadd.f32 %v295, 1e-06
  %v318 = vadd.f32 %v302, 1e-06
  %v319 = vadd.f32 %v309, 1e-06
  %v320 = vadd.f32 %v316, 1e-06
  %v321 = vrcp.pop %v317
  %v322 = vrcp.pop %v318
  %v323 = vrcp.pop %v319
  %v324 = vrcp.pop %v320
  %v325 = vmul.f32 %v265, %v321
  %v326 = vmul.f32 %v266, %v322
  %v327 = vmul.f32 %v267, %v323
  %v328 = vmul.f32 %v268, %v324
  %v329 = vlaneseq
  %v330 = vshrl.u32 %v329, 7
  %v331 = vsub.s32 0, %v330
  %v332 = vrot.slane %v32, %v331
  %v333 = vmul.f32 %v325, %v332
  %v334 = vmul.f32 %v326, %v332
  %v335 = vmul.f32 %v327, %v332
  %v336 = vmul.f32 %v328, %v332
  %v337 = vlaneseq
  %v338 = vshrl.u32 %v337, 7
  %v339 = vsub.s32 0, %v338
  %v340 = vrot.slane %v33, %v339
  %v341 = vadd.f32 %v333, %v340
  %v342 = vadd.f32 %v334, %v340
  %v343 = vadd.f32 %v335, %v340
  %v344 = vadd.f32 %v336, %v340
  %v345 = vpack.c.bf16 %v342, %v341
  %v346 = vpack.c.bf16 %v344, %v343
  %v347 = vld [vmem:[%s3] sm:$0xf]
  %v348 = vld [vmem:[%s3 + $0x4] sm:$0xf]
  %v349 = vld [vmem:[%s3 + $0x8] sm:$0xf]
  %v350 = vld [vmem:[%s3 + $0xc] sm:$0xf]
  %v351 = vld [vmem:[%s4] sm:$0x1]
  %v353 = vlaneseq
  %v354 = vshrl.u32 %v353, 7
  %v355 = vsub.s32 0, %v354
  %v356 = vrot.slane %v351, %v355
  %v362 = vunpack.c.l.b16 %v347
  %v363 = vunpack.c.l.b16 %v348
  %v364 = vunpack.c.l.b16 %v349
  %v365 = vunpack.c.l.b16 %v350
  %v366 = vpack.c.b16 %v363, %v362
  %v367 = vpack.c.b16 %v365, %v364
  %v371 = vsel %vm34, %v345, 0
  %v374 = vsel %vm34, %v346, 0
  %376 = vmatprep.subr.bf16.mxu0 0
  %377 = vmatpush1.bf16.msra.mxu0 %v366
  %378 = vmatprep.subr.bf16.mxu0 0
  %379 = vmatpush1.bf16.msra.mxu0 %v367
  %380 = vmatprep.subr.bf16.mxu0 0
  %381 = vmatpush1.bf16.msra.mxu0 0
  %382 = vmatprep.subr.bf16.mxu0 0
  %383 = vmatpush1.bf16.msra.mxu0 0
  %384 = vmatprep.subr.bf16.mxu0 0
  %385 = vmatpush1.bf16.msra.mxu0 0
  %386 = vmatprep.subr.bf16.mxu0 0
  %387 = vmatpush1.bf16.msra.mxu0 0
  %388 = vmatprep.subr.bf16.mxu0 0
  %389 = vmatpush1.bf16.msra.mxu0 0
  %390 = vmatprep.subr.bf16.mxu0 0
  %391 = vmatpush1.bf16.msra.mxu0 0
  %392 = vmatprep.subr.bf16.mxu0 0
  %393 = vmatpush1.bf16.msra.mxu0 0
  %394 = vmatprep.subr.bf16.mxu0 0
  %395 = vmatpush1.bf16.msra.mxu0 0
  %396 = vmatprep.subr.bf16.mxu0 0
  %397 = vmatpush1.bf16.msra.mxu0 0
  %398 = vmatprep.subr.bf16.mxu0 0
  %399 = vmatpush1.bf16.msra.mxu0 0
  %400 = vmatprep.subr.bf16.mxu0 0
  %401 = vmatpush1.bf16.msra.mxu0 0
  %402 = vmatprep.subr.bf16.mxu0 0
  %403 = vmatpush1.bf16.msra.mxu0 0
  %404 = vmatprep.subr.bf16.mxu0 0
  %405 = vmatpush1.bf16.msra.mxu0 0
  %406 = vmatprep.subr.bf16.mxu0 0
  %407 = vmatpush1.bf16.msra.mxu0 0
  %408 = vmatprep.mubr.bf16.mxu0 0
  %409 = vmatmul.mubr.bf16.gmra.mrb[0].mxu0 %v371
  %v410 = vpop.f32.mrb[0].mxu0
  %v411 = vadd.f32 %v356, %v410
  %v412 = vpop.f32.mrb[0].mxu0
  %v413 = vpop.f32.mrb[0].mxu0
  %v414 = vadd.f32 %v356, %v413
  %v415 = vpop.f32.mrb[0].mxu0
  %416 = vmatprep.mubr.bf16.mxu0 0
  %417 = vmatmul.mubr.bf16.gmra.mrb[0].mxu0 %v374
  %v418 = vpop.f32.mrb[0].mxu0
  %v419 = vadd.f32 %v356, %v418
  %v420 = vpop.f32.mrb[0].mxu0
  %v421 = vpop.f32.mrb[0].mxu0
  %v422 = vadd.f32 %v356, %v421
  %v423 = vpop.f32.mrb[0].mxu0
  %424 = vdwg.mxu0
  %vm425 = vcmask 64512
  %426 = vst.msk [vmem:[%s5] sm:$0xff] %vm425, %v411
  %427 = vst.msk [vmem:[%s5 + $0x8] sm:$0xff] %vm425, %v414
  %428 = vst.msk [vmem:[%s5 + $0x10] sm:$0xff] %vm425, %v419
  %429 = vst.msk [vmem:[%s5 + $0x18] sm:$0xff] %vm425, %v422
  // Predicated region
  $region22: #{_gather_and_proj.1} parent=0 // pred_check
    _
  $region23: #{_gather_and_proj.1} parent=0 // pred_check_branch
    %431 = sbr.rel (0) target = $region25
  $region24: #{_gather_and_proj.1} parent=0 // pred_region
    _
  $region25: #{_gather_and_proj.1} parent=0 // pred_fallthru
    _
  // Predicated region
  $region26: #{_gather_and_proj.1} parent=0 // pred_check
    _
  $region27: #{_gather_and_proj.1} parent=0 // pred_check_branch
    %433 = sbr.rel (0) target = $region29
  $region28: #{_gather_and_proj.1} parent=0 // pred_region
    _
  $region29: #{_gather_and_proj.1} parent=0 // pred_fallthru
    _

</llo_original>
